<compile_context>
chip_gen: v7x
topology: tpu7x:2x2x1
jax: 0.10.0
libtpu: 0.0.40
codegen_flags: <defaults>
</compile_context>

<pallas_src>
import functools

import jax
import jax.numpy as jnp
from jax.experimental import pallas as pl
from jax.experimental.pallas import tpu as pltpu


OUT_LANES = 128  # lane-dense output width; real logits live in [:, :n_out]


def _lstm_kernel(x_ref, w_ih_ref, w_hh_ref, b_ref, w_fc_ref, b_fc_ref, out_ref,
                 *, seq_len, batch, hidden_size):
    T, B, H = seq_len, batch, hidden_size

    # ---- Hoisted input projection: ONE bf16 MXU call for all timesteps. -----
    # x_ref is the natural-order flatten of (B, T, I): row b*T + t.
    gates_x = (jnp.dot(x_ref[...].astype(jnp.bfloat16), w_ih_ref[...],
                       preferred_element_type=jnp.float32)
               + b_ref[...])                                    # (B*T, 4H) f32

    w_hh = w_hh_ref[...]                                        # (H, 4H) bf16, loaded once

    h = jnp.zeros((B, H), jnp.float32)
    c = jnp.zeros((B, H), jnp.float32)

    # ---- Recurrence: fully unrolled; only h @ W_hh on the serial path. ------
    for t in range(T):
        # Static 2-D row slices + sublane concat of this step's precomputed
        # gate rows; independent of h, so off the critical h -> h chain.
        g_x_t = jnp.concatenate(
            [gates_x[b * T + t:b * T + t + 1, :] for b in range(B)],
            axis=0)                                             # (B, 4H)

        gates = g_x_t + jnp.dot(h.astype(jnp.bfloat16), w_hh,
                                preferred_element_type=jnp.float32)  # (B, 4H) f32

        # Two full-vreg transcendental passes in f32 (bf16 never reaches the
        # VPU/EUP path), then static lane slices in PyTorch gate order [i,f,g,o].
        s = jax.nn.sigmoid(gates)
        th = jnp.tanh(gates)

        i_g = s[:, 0 * H:1 * H]
        f_g = s[:, 1 * H:2 * H]
        g_g = th[:, 2 * H:3 * H]
        o_g = s[:, 3 * H:4 * H]

        c = f_g * c + i_g * g_g
        h = o_g * jnp.tanh(c)

    # ---- Fused, lane-dense head: (B, 128) f32 store (unmasked vst). ---------
    # Padding lanes of W_fc / b_fc are exact zeros, so extra columns are zero.
    out_ref[...] = (jnp.dot(h, w_fc_ref[...], preferred_element_type=jnp.float32)
                    + b_fc_ref[...]).astype(out_ref.dtype)


@jax.jit
def lstm_forward(x, w_ih, w_hh, b, w_fc, b_fc):
    """x: (B, T, I) float32 (batch_first).  Returns (B, 2) float32."""
    B, T, I = x.shape
    H = w_hh.shape[0]
    n_out = w_fc.shape[1]

    # Natural-order flatten: contiguous reshape, no transpose / HBM copy.
    x2 = x.reshape(B * T, I)

    # bf16 MXU operands (f32 accumulation happens inside the kernel).
    w_ih_bf = w_ih.astype(jnp.bfloat16)
    w_hh_bf = w_hh.astype(jnp.bfloat16)

    # Zero-pad the fc weights/bias to 128 lanes for a lane-dense output store.
    w_fc_p = jnp.zeros((H, OUT_LANES), jnp.float32).at[:, :n_out].set(w_fc)
    b_fc_p = jnp.zeros((1, OUT_LANES), jnp.float32).at[:, :n_out].set(b_fc)

    kernel = functools.partial(_lstm_kernel, seq_len=T, batch=B, hidden_size=H)

    vmem_spec = pl.BlockSpec(memory_space=pltpu.MemorySpace.VMEM)

    flops = (2 * B * T * I * 4 * H          # hoisted input projection
             + 2 * T * B * H * 4 * H        # recurrent matmuls
             + 2 * B * H * OUT_LANES)       # fc head
    transcendentals = T * (2 * B * 4 * H + B * H)
    bytes_accessed = (x2.size * 4 + w_ih_bf.size * 2 + w_hh_bf.size * 2
                      + b.size * 4 + w_fc_p.size * 4 + b_fc_p.size * 4
                      + B * OUT_LANES * 4)

    out_padded = pl.pallas_call(
        kernel,
        out_shape=jax.ShapeDtypeStruct((B, OUT_LANES), jnp.float32),
        in_specs=[vmem_spec] * 6,
        out_specs=vmem_spec,
        cost_estimate=pl.CostEstimate(flops=flops,
                                      transcendentals=transcendentals,
                                      bytes_accessed=bytes_accessed),
    )(x2, w_ih_bf, w_hh_bf, b, w_fc_p, b_fc_p)

    return out_padded[:, :n_out]


def lstm_reference(x, w_ih, w_hh, b, w_fc, b_fc):
    """Pure-JAX f32 reference matching PyTorch nn.LSTM (1 layer) + Linear."""
    B, T, I = x.shape
    H = w_hh.shape[0]
    h = jnp.zeros((B, H), jnp.float32)
    c = jnp.zeros((B, H), jnp.float32)

    def step(carry, x_t):
        h, c = carry
        gates = x_t @ w_ih + h @ w_hh + b[0]
        i_g = jax.nn.sigmoid(gates[:, 0 * H:1 * H])
        f_g = jax.nn.sigmoid(gates[:, 1 * H:2 * H])
        g_g = jnp.tanh(gates[:, 2 * H:3 * H])
        o_g = jax.nn.sigmoid(gates[:, 3 * H:4 * H])
        c = f_g * c + i_g * g_g
        h = o_g * jnp.tanh(c)
        return (h, c), None

    (h, c), _ = jax.lax.scan(step, (h, c), jnp.transpose(x, (1, 0, 2)))
    return h @ w_fc + b_fc[0]


if __name__ == "__main__":
    # Small shapes consistent with the module: batch=2, seq=8, input=4, hidden=32
    B, T, I, H = 2, 8, 4, 32

    key = jax.random.PRNGKey(0)
    kx, k1, k2, k3, k4, k5, k6 = jax.random.split(key, 7)
    bound = 1.0 / jnp.sqrt(H)

    x = jax.random.normal(kx, (B, T, I), dtype=jnp.float32)

    # PyTorch stores weight_ih: (4H, I), weight_hh: (4H, H); we keep transposed
    # copies (I, 4H) / (H, 4H) for right-multiplication.  Gate order [i,f,g,o].
    w_ih = jax.random.uniform(k1, (I, 4 * H), jnp.float32, -bound, bound)
    w_hh = jax.random.uniform(k2, (H, 4 * H), jnp.float32, -bound, bound)
    b_ih = jax.random.uniform(k3, (1, 4 * H), jnp.float32, -bound, bound)
    b_hh = jax.random.uniform(k4, (1, 4 * H), jnp.float32, -bound, bound)
    b = b_ih + b_hh
    w_fc = jax.random.uniform(k5, (H, 2), jnp.float32, -bound, bound)
    b_fc = jax.random.uniform(k6, (1, 2), jnp.float32, -bound, bound)

    out = lstm_forward(x, w_ih, w_hh, b, w_fc, b_fc)
    out = jax.block_until_ready(out)

    ref = lstm_reference(x, w_ih, w_hh, b, w_fc, b_fc)
    assert out.shape == (B, 2)
    # Tolerance loosened vs the f32 reference to account for bf16 MXU operands
    # in the projection and the 8-step recurrent chain.
    assert jnp.allclose(out, ref, atol=5e-2, rtol=5e-2), (out, ref)

    print("KERNEL_OK")
</pallas_src>

<mosaic_0001>
module attributes {stable_mosaic.version = 11 : i64} {
  func.func @_lstm_kernel(%arg0: memref<16x4xf32, #tpu.memory_space<vmem>>, %arg1: memref<4x128xbf16, #tpu.memory_space<vmem>>, %arg2: memref<32x128xbf16, #tpu.memory_space<vmem>>, %arg3: memref<1x128xf32, #tpu.memory_space<vmem>>, %arg4: memref<32x128xf32, #tpu.memory_space<vmem>>, %arg5: memref<1x128xf32, #tpu.memory_space<vmem>>, %arg6: memref<2x128xf32, #tpu.memory_space<vmem>>) attributes {dimension_semantics = [], scalar_prefetch = 0 : i64, scratch_operands = 0 : i64, tpu.core_type = #tpu.core_type<tc>} {
    %c0 = arith.constant 0 : index
    %c0_0 = arith.constant 0 : index
    %0 = vector.load %arg0[%c0, %c0_0] : memref<16x4xf32, #tpu.memory_space<vmem>>, vector<16x4xf32>
    %1 = arith.truncf %0 : vector<16x4xf32> to vector<16x4xbf16>
    %c0_1 = arith.constant 0 : index
    %c0_2 = arith.constant 0 : index
    %2 = vector.load %arg1[%c0_1, %c0_2] : memref<4x128xbf16, #tpu.memory_space<vmem>>, vector<4x128xbf16>
    %cst = arith.constant dense<0.000000e+00> : vector<16x128xf32>
    %3 = tpu.matmul %1, %2, %cst {dimension_numbers = #tpu.dot_dimension_numbers<[1], [0], [0], [1], [0, 0, 1, 1], [], []>} : vector<16x4xbf16>, vector<4x128xbf16>, vector<16x128xf32> -> vector<16x128xf32>
    %c0_3 = arith.constant 0 : index
    %c0_4 = arith.constant 0 : index
    %4 = vector.load %arg3[%c0_3, %c0_4] : memref<1x128xf32, #tpu.memory_space<vmem>>, vector<1x128xf32>
    %5 = vector.broadcast %4 : vector<1x128xf32> to vector<16x128xf32>
    %6 = arith.addf %3, %5 : vector<16x128xf32>
    %c0_5 = arith.constant 0 : index
    %c0_6 = arith.constant 0 : index
    %7 = vector.load %arg2[%c0_5, %c0_6] : memref<32x128xbf16, #tpu.memory_space<vmem>>, vector<32x128xbf16>
    %cst_7 = arith.constant 0.000000e+00 : f32
    %8 = vector.broadcast %cst_7 : f32 to vector<2x32xf32>
    %cst_8 = arith.constant 0.000000e+00 : f32
    %9 = vector.broadcast %cst_8 : f32 to vector<2x32xf32>
    %10 = vector.extract_strided_slice %6 {offsets = [0, 0], sizes = [1, 128], strides = [1, 1]} : vector<16x128xf32> to vector<1x128xf32>
    %11 = vector.extract_strided_slice %6 {offsets = [8, 0], sizes = [1, 128], strides = [1, 1]} : vector<16x128xf32> to vector<1x128xf32>
    %12 = tpu.concatenate %10, %11 in 0 : vector<1x128xf32>, vector<1x128xf32> -> vector<2x128xf32>
    %13 = arith.truncf %8 : vector<2x32xf32> to vector<2x32xbf16>
    %cst_9 = arith.constant dense<0.000000e+00> : vector<2x128xf32>
    %14 = tpu.matmul %13, %7, %cst_9 {dimension_numbers = #tpu.dot_dimension_numbers<[1], [0], [0], [1], [0, 0, 1, 1], [], []>} : vector<2x32xbf16>, vector<32x128xbf16>, vector<2x128xf32> -> vector<2x128xf32>
    %15 = arith.addf %12, %14 : vector<2x128xf32>
    %16 = arith.negf %15 : vector<2x128xf32>
    %17 = math.exp %16 : vector<2x128xf32>
    %cst_10 = arith.constant 1.000000e+00 : f32
    %18 = vector.broadcast %cst_10 : f32 to vector<2x128xf32>
    %19 = arith.addf %18, %17 : vector<2x128xf32>
    %20 = arith.divf %18, %19 : vector<2x128xf32>
    %21 = math.tanh %15 : vector<2x128xf32>
    %22 = vector.extract_strided_slice %20 {offsets = [0, 0], sizes = [2, 32], strides = [1, 1]} : vector<2x128xf32> to vector<2x32xf32>
    %23 = vector.extract_strided_slice %20 {offsets = [0, 32], sizes = [2, 32], strides = [1, 1]} : vector<2x128xf32> to vector<2x32xf32>
    %24 = vector.extract_strided_slice %21 {offsets = [0, 64], sizes = [2, 32], strides = [1, 1]} : vector<2x128xf32> to vector<2x32xf32>
    %25 = vector.extract_strided_slice %20 {offsets = [0, 96], sizes = [2, 32], strides = [1, 1]} : vector<2x128xf32> to vector<2x32xf32>
    %26 = arith.mulf %23, %9 : vector<2x32xf32>
    %27 = arith.mulf %22, %24 : vector<2x32xf32>
    %28 = arith.addf %26, %27 : vector<2x32xf32>
    %29 = math.tanh %28 : vector<2x32xf32>
    %30 = arith.mulf %25, %29 : vector<2x32xf32>
    %31 = vector.extract_strided_slice %6 {offsets = [1, 0], sizes = [1, 128], strides = [1, 1]} : vector<16x128xf32> to vector<1x128xf32>
    %32 = vector.extract_strided_slice %6 {offsets = [9, 0], sizes = [1, 128], strides = [1, 1]} : vector<16x128xf32> to vector<1x128xf32>
    %33 = tpu.concatenate %31, %32 in 0 : vector<1x128xf32>, vector<1x128xf32> -> vector<2x128xf32>
    %34 = arith.truncf %30 : vector<2x32xf32> to vector<2x32xbf16>
    %cst_11 = arith.constant dense<0.000000e+00> : vector<2x128xf32>
    %35 = tpu.matmul %34, %7, %cst_11 {dimension_numbers = #tpu.dot_dimension_numbers<[1], [0], [0], [1], [0, 0, 1, 1], [], []>} : vector<2x32xbf16>, vector<32x128xbf16>, vector<2x128xf32> -> vector<2x128xf32>
    %36 = arith.addf %33, %35 : vector<2x128xf32>
    %37 = arith.negf %36 : vector<2x128xf32>
    %38 = math.exp %37 : vector<2x128xf32>
    %cst_12 = arith.constant 1.000000e+00 : f32
    %39 = vector.broadcast %cst_12 : f32 to vector<2x128xf32>
    %40 = arith.addf %39, %38 : vector<2x128xf32>
    %41 = arith.divf %39, %40 : vector<2x128xf32>
    %42 = math.tanh %36 : vector<2x128xf32>
    %43 = vector.extract_strided_slice %41 {offsets = [0, 0], sizes = [2, 32], strides = [1, 1]} : vector<2x128xf32> to vector<2x32xf32>
    %44 = vector.extract_strided_slice %41 {offsets = [0, 32], sizes = [2, 32], strides = [1, 1]} : vector<2x128xf32> to vector<2x32xf32>
    %45 = vector.extract_strided_slice %42 {offsets = [0, 64], sizes = [2, 32], strides = [1, 1]} : vector<2x128xf32> to vector<2x32xf32>
    %46 = vector.extract_strided_slice %41 {offsets = [0, 96], sizes = [2, 32], strides = [1, 1]} : vector<2x128xf32> to vector<2x32xf32>
    %47 = arith.mulf %44, %28 : vector<2x32xf32>
    %48 = arith.mulf %43, %45 : vector<2x32xf32>
    %49 = arith.addf %47, %48 : vector<2x32xf32>
    %50 = math.tanh %49 : vector<2x32xf32>
    %51 = arith.mulf %46, %50 : vector<2x32xf32>
    %52 = vector.extract_strided_slice %6 {offsets = [2, 0], sizes = [1, 128], strides = [1, 1]} : vector<16x128xf32> to vector<1x128xf32>
    %53 = vector.extract_strided_slice %6 {offsets = [10, 0], sizes = [1, 128], strides = [1, 1]} : vector<16x128xf32> to vector<1x128xf32>
    %54 = tpu.concatenate %52, %53 in 0 : vector<1x128xf32>, vector<1x128xf32> -> vector<2x128xf32>
    %55 = arith.truncf %51 : vector<2x32xf32> to vector<2x32xbf16>
    %cst_13 = arith.constant dense<0.000000e+00> : vector<2x128xf32>
    %56 = tpu.matmul %55, %7, %cst_13 {dimension_numbers = #tpu.dot_dimension_numbers<[1], [0], [0], [1], [0, 0, 1, 1], [], []>} : vector<2x32xbf16>, vector<32x128xbf16>, vector<2x128xf32> -> vector<2x128xf32>
    %57 = arith.addf %54, %56 : vector<2x128xf32>
    %58 = arith.negf %57 : vector<2x128xf32>
    %59 = math.exp %58 : vector<2x128xf32>
    %cst_14 = arith.constant 1.000000e+00 : f32
    %60 = vector.broadcast %cst_14 : f32 to vector<2x128xf32>
    %61 = arith.addf %60, %59 : vector<2x128xf32>
    %62 = arith.divf %60, %61 : vector<2x128xf32>
    %63 = math.tanh %57 : vector<2x128xf32>
    %64 = vector.extract_strided_slice %62 {offsets = [0, 0], sizes = [2, 32], strides = [1, 1]} : vector<2x128xf32> to vector<2x32xf32>
    %65 = vector.extract_strided_slice %62 {offsets = [0, 32], sizes = [2, 32], strides = [1, 1]} : vector<2x128xf32> to vector<2x32xf32>
    %66 = vector.extract_strided_slice %63 {offsets = [0, 64], sizes = [2, 32], strides = [1, 1]} : vector<2x128xf32> to vector<2x32xf32>
    %67 = vector.extract_strided_slice %62 {offsets = [0, 96], sizes = [2, 32], strides = [1, 1]} : vector<2x128xf32> to vector<2x32xf32>
    %68 = arith.mulf %65, %49 : vector<2x32xf32>
    %69 = arith.mulf %64, %66 : vector<2x32xf32>
    %70 = arith.addf %68, %69 : vector<2x32xf32>
    %71 = math.tanh %70 : vector<2x32xf32>
    %72 = arith.mulf %67, %71 : vector<2x32xf32>
    %73 = vector.extract_strided_slice %6 {offsets = [3, 0], sizes = [1, 128], strides = [1, 1]} : vector<16x128xf32> to vector<1x128xf32>
    %74 = vector.extract_strided_slice %6 {offsets = [11, 0], sizes = [1, 128], strides = [1, 1]} : vector<16x128xf32> to vector<1x128xf32>
    %75 = tpu.concatenate %73, %74 in 0 : vector<1x128xf32>, vector<1x128xf32> -> vector<2x128xf32>
    %76 = arith.truncf %72 : vector<2x32xf32> to vector<2x32xbf16>
    %cst_15 = arith.constant dense<0.000000e+00> : vector<2x128xf32>
    %77 = tpu.matmul %76, %7, %cst_15 {dimension_numbers = #tpu.dot_dimension_numbers<[1], [0], [0], [1], [0, 0, 1, 1], [], []>} : vector<2x32xbf16>, vector<32x128xbf16>, vector<2x128xf32> -> vector<2x128xf32>
    %78 = arith.addf %75, %77 : vector<2x128xf32>
    %79 = arith.negf %78 : vector<2x128xf32>
    %80 = math.exp %79 : vector<2x128xf32>
    %cst_16 = arith.constant 1.000000e+00 : f32
    %81 = vector.broadcast %cst_16 : f32 to vector<2x128xf32>
    %82 = arith.addf %81, %80 : vector<2x128xf32>
    %83 = arith.divf %81, %82 : vector<2x128xf32>
    %84 = math.tanh %78 : vector<2x128xf32>
    %85 = vector.extract_strided_slice %83 {offsets = [0, 0], sizes = [2, 32], strides = [1, 1]} : vector<2x128xf32> to vector<2x32xf32>
    %86 = vector.extract_strided_slice %83 {offsets = [0, 32], sizes = [2, 32], strides = [1, 1]} : vector<2x128xf32> to vector<2x32xf32>
    %87 = vector.extract_strided_slice %84 {offsets = [0, 64], sizes = [2, 32], strides = [1, 1]} : vector<2x128xf32> to vector<2x32xf32>
    %88 = vector.extract_strided_slice %83 {offsets = [0, 96], sizes = [2, 32], strides = [1, 1]} : vector<2x128xf32> to vector<2x32xf32>
    %89 = arith.mulf %86, %70 : vector<2x32xf32>
    %90 = arith.mulf %85, %87 : vector<2x32xf32>
    %91 = arith.addf %89, %90 : vector<2x32xf32>
    %92 = math.tanh %91 : vector<2x32xf32>
    %93 = arith.mulf %88, %92 : vector<2x32xf32>
    %94 = vector.extract_strided_slice %6 {offsets = [4, 0], sizes = [1, 128], strides = [1, 1]} : vector<16x128xf32> to vector<1x128xf32>
    %95 = vector.extract_strided_slice %6 {offsets = [12, 0], sizes = [1, 128], strides = [1, 1]} : vector<16x128xf32> to vector<1x128xf32>
    %96 = tpu.concatenate %94, %95 in 0 : vector<1x128xf32>, vector<1x128xf32> -> vector<2x128xf32>
    %97 = arith.truncf %93 : vector<2x32xf32> to vector<2x32xbf16>
    %cst_17 = arith.constant dense<0.000000e+00> : vector<2x128xf32>
    %98 = tpu.matmul %97, %7, %cst_17 {dimension_numbers = #tpu.dot_dimension_numbers<[1], [0], [0], [1], [0, 0, 1, 1], [], []>} : vector<2x32xbf16>, vector<32x128xbf16>, vector<2x128xf32> -> vector<2x128xf32>
    %99 = arith.addf %96, %98 : vector<2x128xf32>
    %100 = arith.negf %99 : vector<2x128xf32>
    %101 = math.exp %100 : vector<2x128xf32>
    %cst_18 = arith.constant 1.000000e+00 : f32
    %102 = vector.broadcast %cst_18 : f32 to vector<2x128xf32>
    %103 = arith.addf %102, %101 : vector<2x128xf32>
    %104 = arith.divf %102, %103 : vector<2x128xf32>
    %105 = math.tanh %99 : vector<2x128xf32>
    %106 = vector.extract_strided_slice %104 {offsets = [0, 0], sizes = [2, 32], strides = [1, 1]} : vector<2x128xf32> to vector<2x32xf32>
    %107 = vector.extract_strided_slice %104 {offsets = [0, 32], sizes = [2, 32], strides = [1, 1]} : vector<2x128xf32> to vector<2x32xf32>
    %108 = vector.extract_strided_slice %105 {offsets = [0, 64], sizes = [2, 32], strides = [1, 1]} : vector<2x128xf32> to vector<2x32xf32>
    %109 = vector.extract_strided_slice %104 {offsets = [0, 96], sizes = [2, 32], strides = [1, 1]} : vector<2x128xf32> to vector<2x32xf32>
    %110 = arith.mulf %107, %91 : vector<2x32xf32>
    %111 = arith.mulf %106, %108 : vector<2x32xf32>
    %112 = arith.addf %110, %111 : vector<2x32xf32>
    %113 = math.tanh %112 : vector<2x32xf32>
    %114 = arith.mulf %109, %113 : vector<2x32xf32>
    %115 = vector.extract_strided_slice %6 {offsets = [5, 0], sizes = [1, 128], strides = [1, 1]} : vector<16x128xf32> to vector<1x128xf32>
    %116 = vector.extract_strided_slice %6 {offsets = [13, 0], sizes = [1, 128], strides = [1, 1]} : vector<16x128xf32> to vector<1x128xf32>
    %117 = tpu.concatenate %115, %116 in 0 : vector<1x128xf32>, vector<1x128xf32> -> vector<2x128xf32>
    %118 = arith.truncf %114 : vector<2x32xf32> to vector<2x32xbf16>
    %cst_19 = arith.constant dense<0.000000e+00> : vector<2x128xf32>
    %119 = tpu.matmul %118, %7, %cst_19 {dimension_numbers = #tpu.dot_dimension_numbers<[1], [0], [0], [1], [0, 0, 1, 1], [], []>} : vector<2x32xbf16>, vector<32x128xbf16>, vector<2x128xf32> -> vector<2x128xf32>
    %120 = arith.addf %117, %119 : vector<2x128xf32>
    %121 = arith.negf %120 : vector<2x128xf32>
    %122 = math.exp %121 : vector<2x128xf32>
    %cst_20 = arith.constant 1.000000e+00 : f32
    %123 = vector.broadcast %cst_20 : f32 to vector<2x128xf32>
    %124 = arith.addf %123, %122 : vector<2x128xf32>
    %125 = arith.divf %123, %124 : vector<2x128xf32>
    %126 = math.tanh %120 : vector<2x128xf32>
    %127 = vector.extract_strided_slice %125 {offsets = [0, 0], sizes = [2, 32], strides = [1, 1]} : vector<2x128xf32> to vector<2x32xf32>
    %128 = vector.extract_strided_slice %125 {offsets = [0, 32], sizes = [2, 32], strides = [1, 1]} : vector<2x128xf32> to vector<2x32xf32>
    %129 = vector.extract_strided_slice %126 {offsets = [0, 64], sizes = [2, 32], strides = [1, 1]} : vector<2x128xf32> to vector<2x32xf32>
    %130 = vector.extract_strided_slice %125 {offsets = [0, 96], sizes = [2, 32], strides = [1, 1]} : vector<2x128xf32> to vector<2x32xf32>
    %131 = arith.mulf %128, %112 : vector<2x32xf32>
    %132 = arith.mulf %127, %129 : vector<2x32xf32>
    %133 = arith.addf %131, %132 : vector<2x32xf32>
    %134 = math.tanh %133 : vector<2x32xf32>
    %135 = arith.mulf %130, %134 : vector<2x32xf32>
    %136 = vector.extract_strided_slice %6 {offsets = [6, 0], sizes = [1, 128], strides = [1, 1]} : vector<16x128xf32> to vector<1x128xf32>
    %137 = vector.extract_strided_slice %6 {offsets = [14, 0], sizes = [1, 128], strides = [1, 1]} : vector<16x128xf32> to vector<1x128xf32>
    %138 = tpu.concatenate %136, %137 in 0 : vector<1x128xf32>, vector<1x128xf32> -> vector<2x128xf32>
    %139 = arith.truncf %135 : vector<2x32xf32> to vector<2x32xbf16>
    %cst_21 = arith.constant dense<0.000000e+00> : vector<2x128xf32>
    %140 = tpu.matmul %139, %7, %cst_21 {dimension_numbers = #tpu.dot_dimension_numbers<[1], [0], [0], [1], [0, 0, 1, 1], [], []>} : vector<2x32xbf16>, vector<32x128xbf16>, vector<2x128xf32> -> vector<2x128xf32>
    %141 = arith.addf %138, %140 : vector<2x128xf32>
    %142 = arith.negf %141 : vector<2x128xf32>
    %143 = math.exp %142 : vector<2x128xf32>
    %cst_22 = arith.constant 1.000000e+00 : f32
    %144 = vector.broadcast %cst_22 : f32 to vector<2x128xf32>
    %145 = arith.addf %144, %143 : vector<2x128xf32>
    %146 = arith.divf %144, %145 : vector<2x128xf32>
    %147 = math.tanh %141 : vector<2x128xf32>
    %148 = vector.extract_strided_slice %146 {offsets = [0, 0], sizes = [2, 32], strides = [1, 1]} : vector<2x128xf32> to vector<2x32xf32>
    %149 = vector.extract_strided_slice %146 {offsets = [0, 32], sizes = [2, 32], strides = [1, 1]} : vector<2x128xf32> to vector<2x32xf32>
    %150 = vector.extract_strided_slice %147 {offsets = [0, 64], sizes = [2, 32], strides = [1, 1]} : vector<2x128xf32> to vector<2x32xf32>
    %151 = vector.extract_strided_slice %146 {offsets = [0, 96], sizes = [2, 32], strides = [1, 1]} : vector<2x128xf32> to vector<2x32xf32>
    %152 = arith.mulf %149, %133 : vector<2x32xf32>
    %153 = arith.mulf %148, %150 : vector<2x32xf32>
    %154 = arith.addf %152, %153 : vector<2x32xf32>
    %155 = math.tanh %154 : vector<2x32xf32>
    %156 = arith.mulf %151, %155 : vector<2x32xf32>
    %157 = vector.extract_strided_slice %6 {offsets = [7, 0], sizes = [1, 128], strides = [1, 1]} : vector<16x128xf32> to vector<1x128xf32>
    %158 = vector.extract_strided_slice %6 {offsets = [15, 0], sizes = [1, 128], strides = [1, 1]} : vector<16x128xf32> to vector<1x128xf32>
    %159 = tpu.concatenate %157, %158 in 0 : vector<1x128xf32>, vector<1x128xf32> -> vector<2x128xf32>
    %160 = arith.truncf %156 : vector<2x32xf32> to vector<2x32xbf16>
    %cst_23 = arith.constant dense<0.000000e+00> : vector<2x128xf32>
    %161 = tpu.matmul %160, %7, %cst_23 {dimension_numbers = #tpu.dot_dimension_numbers<[1], [0], [0], [1], [0, 0, 1, 1], [], []>} : vector<2x32xbf16>, vector<32x128xbf16>, vector<2x128xf32> -> vector<2x128xf32>
    %162 = arith.addf %159, %161 : vector<2x128xf32>
    %163 = arith.negf %162 : vector<2x128xf32>
    %164 = math.exp %163 : vector<2x128xf32>
    %cst_24 = arith.constant 1.000000e+00 : f32
    %165 = vector.broadcast %cst_24 : f32 to vector<2x128xf32>
    %166 = arith.addf %165, %164 : vector<2x128xf32>
    %167 = arith.divf %165, %166 : vector<2x128xf32>
    %168 = math.tanh %162 : vector<2x128xf32>
    %169 = vector.extract_strided_slice %167 {offsets = [0, 0], sizes = [2, 32], strides = [1, 1]} : vector<2x128xf32> to vector<2x32xf32>
    %170 = vector.extract_strided_slice %167 {offsets = [0, 32], sizes = [2, 32], strides = [1, 1]} : vector<2x128xf32> to vector<2x32xf32>
    %171 = vector.extract_strided_slice %168 {offsets = [0, 64], sizes = [2, 32], strides = [1, 1]} : vector<2x128xf32> to vector<2x32xf32>
    %172 = vector.extract_strided_slice %167 {offsets = [0, 96], sizes = [2, 32], strides = [1, 1]} : vector<2x128xf32> to vector<2x32xf32>
    %173 = arith.mulf %170, %154 : vector<2x32xf32>
    %174 = arith.mulf %169, %171 : vector<2x32xf32>
    %175 = arith.addf %173, %174 : vector<2x32xf32>
    %176 = math.tanh %175 : vector<2x32xf32>
    %177 = arith.mulf %172, %176 : vector<2x32xf32>
    %c0_25 = arith.constant 0 : index
    %c0_26 = arith.constant 0 : index
    %178 = vector.load %arg4[%c0_25, %c0_26] : memref<32x128xf32, #tpu.memory_space<vmem>>, vector<32x128xf32>
    %cst_27 = arith.constant dense<0.000000e+00> : vector<2x128xf32>
    %179 = tpu.matmul %177, %178, %cst_27 {dimension_numbers = #tpu.dot_dimension_numbers<[1], [0], [0], [1], [0, 0, 1, 1], [], []>} : vector<2x32xf32>, vector<32x128xf32>, vector<2x128xf32> -> vector<2x128xf32>
    %c0_28 = arith.constant 0 : index
    %c0_29 = arith.constant 0 : index
    %180 = vector.load %arg5[%c0_28, %c0_29] : memref<1x128xf32, #tpu.memory_space<vmem>>, vector<1x128xf32>
    %181 = vector.broadcast %180 : vector<1x128xf32> to vector<2x128xf32>
    %182 = arith.addf %179, %181 : vector<2x128xf32>
    %c0_30 = arith.constant 0 : index
    %c0_31 = arith.constant 0 : index
    %183 = vector.load %arg6[%c0_30, %c0_31] : memref<2x128xf32, #tpu.memory_space<vmem>>, vector<2x128xf32>
    tpu.vector_store %arg6[%c0_30, %c0_31], %182 {strides = array<i32>} : memref<2x128xf32, #tpu.memory_space<vmem>>, vector<2x128xf32>,
    return
  }
}

</mosaic_0001>

<llo_original>
// kernel: lstm_forward.1
$region0: #{lstm_forward.1}
  #allocation0 [shape = 'u32[]', space=smem, size = 0x4, offset = 0x4, fixed_abs, tag = 'smem constant byte address 0x4 - core index']
  #allocation1 [shape = 'u32[144,128]{1,0:T(1,128)}', space=vmem, size = 0x12000, scoped, tag = 'internal scratch']
  %s0 = inlined_call_operand.vmem [shape: f32[16,4], index: 0, kind: input, shape index: {}]
  %s1 = inlined_call_operand.vmem [shape: bf16[4,128], index: 1, kind: input, shape index: {}]
  %s2 = inlined_call_operand.vmem [shape: bf16[32,128], index: 2, kind: input, shape index: {}]
  %s3 = inlined_call_operand.vmem [shape: f32[1,128], index: 3, kind: input, shape index: {}]
  %s4 = inlined_call_operand.vmem [shape: f32[32,128], index: 4, kind: input, shape index: {}]
  %s5 = inlined_call_operand.vmem [shape: f32[1,128], index: 5, kind: input, shape index: {}]
  %s6 = inlined_call_operand.hbm [shape: f32[2,128], index: 6, kind: output, shape index: {}]
  %s7 = sld [smem:[#allocation0]]
  $region34: #{lstm_forward.1} parent=0
    _
  %s9 = ssub.s32 1, %s7
  %s10 = scalar_select 0, %s9, %s7
  $region1: #{lstm_forward.1} parent=0
    #allocation2 [shape = 'u8[1024]{0}', space=vmem, size = 0x400, scoped, tag = 'output window, operand 0, single buffered']
    #allocation3 [shape = 's32[1]{0}', space=sflag, size = 0x4, scoped, tag = 'scoped memory for lstm_forward.1']
    %11 = vsyncpa [#allocation3], 0
    // Predicated region
    $region2: #{lstm_forward.1} parent=1 // pred_check
      _
    $region3: #{lstm_forward.1} parent=1 // pred_check_branch
      %13 = sbr.rel (0) target = $region5
    $region4: #{lstm_forward.1} parent=1 // pred_region
      _
    $region5: #{lstm_forward.1} parent=1 // pred_fallthru
      _
    // Predicated region
    $region6: #{lstm_forward.1} parent=1 // pred_check
      _
    $region7: #{lstm_forward.1} parent=1 // pred_check_branch
      %15 = sbr.rel (0) target = $region9
    $region8: #{lstm_forward.1} parent=1 // pred_region
      _
    $region9: #{lstm_forward.1} parent=1 // pred_fallthru
      _
    // Predicated region
    $region10: #{lstm_forward.1} parent=1 // pred_check
      _
    $region11: #{lstm_forward.1} parent=1 // pred_check_branch
      %17 = sbr.rel (0) target = $region13
    $region12: #{lstm_forward.1} parent=1 // pred_region
      _
    $region13: #{lstm_forward.1} parent=1 // pred_fallthru
      _
    // Predicated region
    $region14: #{lstm_forward.1} parent=1 // pred_check
      _
    $region15: #{lstm_forward.1} parent=1 // pred_check_branch
      %19 = sbr.rel (0) target = $region17
    $region16: #{lstm_forward.1} parent=1 // pred_region
      _
    $region17: #{lstm_forward.1} parent=1 // pred_fallthru
      _
    // Predicated region
    $region18: #{lstm_forward.1} parent=1 // pred_check
      _
    $region19: #{lstm_forward.1} parent=1 // pred_check_branch
      %21 = sbr.rel (0) target = $region21
    $region20: #{lstm_forward.1} parent=1 // pred_region
      _
    $region21: #{lstm_forward.1} parent=1 // pred_fallthru
      _
    // Predicated region
    $region22: #{lstm_forward.1} parent=1 // pred_check
      _
    $region23: #{lstm_forward.1} parent=1 // pred_check_branch
      %23 = sbr.rel (0) target = $region25
    $region24: #{lstm_forward.1} parent=1 // pred_region
      _
    $region25: #{lstm_forward.1} parent=1 // pred_fallthru
      _
    %v25 = vld [vmem:[%s0] sm:$0xff]
    %v26 = vld [vmem:[%s0 + $0x8] sm:$0xff]
    %v27 = vpack.c.bf16 %v26, %v25
    %v28 = vld [vmem:[%s1] sm:$0x3]
    %v29 = vld [vmem:[%s3] sm:$0x1]
    %v31 = vlaneseq
    %v32 = vshrl.u32 %v31, 7
    %v33 = vsub.s32 0, %v32
    %v34 = vrot.slane %v29, %v33
    %vm36 = vcmask 31744
    %v38 = vsel %vm36, %v27, 0
    %vm40 = vcmask 1041408
    %v42 = vsel %vm40, %v28, 0
    %44 = vmatprep.subr.bf16.mxu0 0
    %45 = vmatpush1.bf16.msra.mxu0 %v42
    %46 = vmatprep.subr.bf16.mxu0 0
    %47 = vmatpush1.bf16.msra.mxu0 0
    %48 = vmatprep.subr.bf16.mxu0 0
    %49 = vmatpush1.bf16.msra.mxu0 0
    %50 = vmatprep.subr.bf16.mxu0 0
    %51 = vmatpush1.bf16.msra.mxu0 0
    %52 = vmatprep.subr.bf16.mxu0 0
    %53 = vmatpush1.bf16.msra.mxu0 0
    %54 = vmatprep.subr.bf16.mxu0 0
    %55 = vmatpush1.bf16.msra.mxu0 0
    %56 = vmatprep.subr.bf16.mxu0 0
    %57 = vmatpush1.bf16.msra.mxu0 0
    %58 = vmatprep.subr.bf16.mxu0 0
    %59 = vmatpush1.bf16.msra.mxu0 0
    %60 = vmatprep.subr.bf16.mxu0 0
    %61 = vmatpush1.bf16.msra.mxu0 0
    %62 = vmatprep.subr.bf16.mxu0 0
    %63 = vmatpush1.bf16.msra.mxu0 0
    %64 = vmatprep.subr.bf16.mxu0 0
    %65 = vmatpush1.bf16.msra.mxu0 0
    %66 = vmatprep.subr.bf16.mxu0 0
    %67 = vmatpush1.bf16.msra.mxu0 0
    %68 = vmatprep.subr.bf16.mxu0 0
    %69 = vmatpush1.bf16.msra.mxu0 0
    %70 = vmatprep.subr.bf16.mxu0 0
    %71 = vmatpush1.bf16.msra.mxu0 0
    %72 = vmatprep.subr.bf16.mxu0 0
    %73 = vmatpush1.bf16.msra.mxu0 0
    %74 = vmatprep.subr.bf16.mxu0 0
    %75 = vmatpush1.bf16.msra.mxu0 0
    %76 = vmatprep.mubr.bf16.mxu0 0
    %77 = vmatmul.mubr.bf16.gmra.mrb[0].mxu0 %v38
    %v78 = vpop.f32.mrb[0].mxu0
    %v79 = vadd.f32 %v34, %v78
    %v80 = vpop.f32.mrb[0].mxu0
    %v81 = vpop.f32.mrb[0].mxu0
    %v82 = vadd.f32 %v34, %v81
    %v83 = vpop.f32.mrb[0].mxu0
    %84 = vdwg.mxu0
    %v85 = vld [vmem:[%s2] sm:$0xf]
    %v86 = vld [vmem:[%s2 + $0x4] sm:$0xf]
    %v87 = vld [vmem:[%s2 + $0x8] sm:$0xf]
    %v88 = vld [vmem:[%s2 + $0xc] sm:$0xf]
    %v90 = vrot.slane %v82, 7
    %vm92 = vcmask 1040384
    %v93 = vsel %vm92, %v79, %v90
    %v98 = vunpack.c.l.b16 %v85
    %v99 = vunpack.c.l.b16 %v86
    %v100 = vunpack.c.l.b16 %v87
    %v101 = vunpack.c.l.b16 %v88
    %v102 = vpack.c.b16 %v99, %v98
    %v103 = vpack.c.b16 %v101, %v100
    %vm106 = vcmask 261120
    %v108 = vsel %vm106, 0, 0
    %110 = vmatprep.subr.bf16.mxu0 0
    %111 = vmatpush1.bf16.msra.mxu0 %v102
    %112 = vmatprep.subr.bf16.mxu0 0
    %113 = vmatpush1.bf16.msra.mxu0 %v103
    %114 = vmatprep.subr.bf16.mxu0 0
    %115 = vmatpush1.bf16.msra.mxu0 0
    %116 = vmatprep.subr.bf16.mxu0 0
    %117 = vmatpush1.bf16.msra.mxu0 0
    %118 = vmatprep.subr.bf16.mxu0 0
    %119 = vmatpush1.bf16.msra.mxu0 0
    %120 = vmatprep.subr.bf16.mxu0 0
    %121 = vmatpush1.bf16.msra.mxu0 0
    %122 = vmatprep.subr.bf16.mxu0 0
    %123 = vmatpush1.bf16.msra.mxu0 0
    %124 = vmatprep.subr.bf16.mxu0 0
    %125 = vmatpush1.bf16.msra.mxu0 0
    %126 = vmatprep.subr.bf16.mxu0 0
    %127 = vmatpush1.bf16.msra.mxu0 0
    %128 = vmatprep.subr.bf16.mxu0 0
    %129 = vmatpush1.bf16.msra.mxu0 0
    %130 = vmatprep.subr.bf16.mxu0 0
    %131 = vmatpush1.bf16.msra.mxu0 0
    %132 = vmatprep.subr.bf16.mxu0 0
    %133 = vmatpush1.bf16.msra.mxu0 0
    %134 = vmatprep.subr.bf16.mxu0 0
    %135 = vmatpush1.bf16.msra.mxu0 0
    %136 = vmatprep.subr.bf16.mxu0 0
    %137 = vmatpush1.bf16.msra.mxu0 0
    %138 = vmatprep.subr.bf16.mxu0 0
    %139 = vmatpush1.bf16.msra.mxu0 0
    %140 = vmatprep.subr.bf16.mxu0 0
    %141 = vmatpush1.bf16.msra.mxu0 0
    %142 = vmatprep.mubr.bf16.mxu0 0
    %143 = vmatmul.mubr.bf16.gmra.mrb[0].mxu0 %v108
    %v144 = vpop.f32.mrb[0].mxu0
    %v145 = vadd.f32 0.0, %v144
    %v146 = vpop.f32.mrb[0].mxu0
    %v147 = vpop.f32.mrb[0].mxu0
    %v148 = vpop.f32.mrb[0].mxu0
    %149 = vdwg.mxu0
    %v150 = vadd.f32 %v93, %v145
    %v151 = vxor.u32 %v150, 2147483648
    %v152 = vmul.f32 %v151, 1.442695
    %v153 = vpow.pop %v152
    %v154 = vadd.f32 %v153, 1.0
    %v155 = vrcp.pop %v154
    %v156 = vmul.f32 1.0, %v155
    %v157 = vtanh.pop %v150
    %v158 = vmul.f32 %v156, 0.0
    %160 = vrot.lane.b32.xlu0 %v157, 64
    %v161 = vpop.permute.xlu0 %160
    %v163 = vmul.f32 %v156, %v161
    %165 = vrot.lane.b32.xlu0 %v163, 32
    %v166 = vpop.permute.xlu0 %165
    %v168 = vadd.f32 %v158, %v166
    %v169 = vtanh.pop %v168
    %171 = vrot.lane.b32.xlu0 %v169, 64
    %v172 = vpop.permute.xlu0 %171
    %v174 = vmul.f32 %v156, %v172
    %v176 = vrot.slane %v79, 1
    %v178 = vsel %vm92, %v176, %v82
    %v179 = vpack.c.bf16 %v174, %v174
    %181 = vrot.lane.b32.xlu0 %v179, 32
    %v182 = vpop.permute.xlu0 %181
    %v184 = vsel %vm106, %v182, 0
    %186 = vmatprep.subr.bf16.mxu0 0
    %187 = vmatpush1.bf16.msra.mxu0 %v102
    %188 = vmatprep.subr.bf16.mxu0 0
    %189 = vmatpush1.bf16.msra.mxu0 %v103
    %190 = vmatprep.subr.bf16.mxu0 0
    %191 = vmatpush1.bf16.msra.mxu0 0
    %192 = vmatprep.subr.bf16.mxu0 0
    %193 = vmatpush1.bf16.msra.mxu0 0
    %194 = vmatprep.subr.bf16.mxu0 0
    %195 = vmatpush1.bf16.msra.mxu0 0
    %196 = vmatprep.subr.bf16.mxu0 0
    %197 = vmatpush1.bf16.msra.mxu0 0
    %198 = vmatprep.subr.bf16.mxu0 0
    %199 = vmatpush1.bf16.msra.mxu0 0
    %200 = vmatprep.subr.bf16.mxu0 0
    %201 = vmatpush1.bf16.msra.mxu0 0
    %202 = vmatprep.subr.bf16.mxu0 0
    %203 = vmatpush1.bf16.msra.mxu0 0
    %204 = vmatprep.subr.bf16.mxu0 0
    %205 = vmatpush1.bf16.msra.mxu0 0
    %206 = vmatprep.subr.bf16.mxu0 0
    %207 = vmatpush1.bf16.msra.mxu0 0
    %208 = vmatprep.subr.bf16.mxu0 0
    %209 = vmatpush1.bf16.msra.mxu0 0
    %210 = vmatprep.subr.bf16.mxu0 0
    %211 = vmatpush1.bf16.msra.mxu0 0
    %212 = vmatprep.subr.bf16.mxu0 0
    %213 = vmatpush1.bf16.msra.mxu0 0
    %214 = vmatprep.subr.bf16.mxu0 0
    %215 = vmatpush1.bf16.msra.mxu0 0
    %216 = vmatprep.subr.bf16.mxu0 0
    %217 = vmatpush1.bf16.msra.mxu0 0
    %218 = vmatprep.mubr.bf16.mxu0 0
    %219 = vmatmul.mubr.bf16.gmra.mrb[0].mxu0 %v184
    %v220 = vpop.f32.mrb[0].mxu0
    %v221 = vadd.f32 0.0, %v220
    %v222 = vpop.f32.mrb[0].mxu0
    %v223 = vpop.f32.mrb[0].mxu0
    %v224 = vpop.f32.mrb[0].mxu0
    %225 = vdwg.mxu0
    %v226 = vadd.f32 %v178, %v221
    %v227 = vxor.u32 %v226, 2147483648
    %v228 = vmul.f32 %v227, 1.442695
    %v229 = vpow.pop %v228
    %v230 = vadd.f32 %v229, 1.0
    %v231 = vrcp.pop %v230
    %v232 = vmul.f32 1.0, %v231
    %v233 = vtanh.pop %v226
    %v234 = vmul.f32 %v232, %v168
    %236 = vrot.lane.b32.xlu0 %v233, 64
    %v237 = vpop.permute.xlu0 %236
    %v239 = vmul.f32 %v232, %v237
    %241 = vrot.lane.b32.xlu0 %v239, 32
    %v242 = vpop.permute.xlu0 %241
    %v244 = vadd.f32 %v234, %v242
    %v245 = vtanh.pop %v244
    %247 = vrot.lane.b32.xlu0 %v245, 64
    %v248 = vpop.permute.xlu0 %247
    %v250 = vmul.f32 %v232, %v248
    %v251 = vrot.slane %v79, 2
    %v253 = vrot.slane %v82, 1
    %v255 = vsel %vm92, %v251, %v253
    %v256 = vpack.c.bf16 %v250, %v250
    %258 = vrot.lane.b32.xlu0 %v256, 32
    %v259 = vpop.permute.xlu0 %258
    %v261 = vsel %vm106, %v259, 0
    %263 = vmatprep.subr.bf16.mxu0 0
    %264 = vmatpush1.bf16.msra.mxu0 %v102
    %265 = vmatprep.subr.bf16.mxu0 0
    %266 = vmatpush1.bf16.msra.mxu0 %v103
    %267 = vmatprep.subr.bf16.mxu0 0
    %268 = vmatpush1.bf16.msra.mxu0 0
    %269 = vmatprep.subr.bf16.mxu0 0
    %270 = vmatpush1.bf16.msra.mxu0 0
    %271 = vmatprep.subr.bf16.mxu0 0
    %272 = vmatpush1.bf16.msra.mxu0 0
    %273 = vmatprep.subr.bf16.mxu0 0
    %274 = vmatpush1.bf16.msra.mxu0 0
    %275 = vmatprep.subr.bf16.mxu0 0
    %276 = vmatpush1.bf16.msra.mxu0 0
    %277 = vmatprep.subr.bf16.mxu0 0
    %278 = vmatpush1.bf16.msra.mxu0 0
    %279 = vmatprep.subr.bf16.mxu0 0
    %280 = vmatpush1.bf16.msra.mxu0 0
    %281 = vmatprep.subr.bf16.mxu0 0
    %282 = vmatpush1.bf16.msra.mxu0 0
    %283 = vmatprep.subr.bf16.mxu0 0
    %284 = vmatpush1.bf16.msra.mxu0 0
    %285 = vmatprep.subr.bf16.mxu0 0
    %286 = vmatpush1.bf16.msra.mxu0 0
    %287 = vmatprep.subr.bf16.mxu0 0
    %288 = vmatpush1.bf16.msra.mxu0 0
    %289 = vmatprep.subr.bf16.mxu0 0
    %290 = vmatpush1.bf16.msra.mxu0 0
    %291 = vmatprep.subr.bf16.mxu0 0
    %292 = vmatpush1.bf16.msra.mxu0 0
    %293 = vmatprep.subr.bf16.mxu0 0
    %294 = vmatpush1.bf16.msra.mxu0 0
    %295 = vmatprep.mubr.bf16.mxu0 0
    %296 = vmatmul.mubr.bf16.gmra.mrb[0].mxu0 %v261
    %v297 = vpop.f32.mrb[0].mxu0
    %v298 = vadd.f32 0.0, %v297
    %v299 = vpop.f32.mrb[0].mxu0
    %v300 = vpop.f32.mrb[0].mxu0
    %v301 = vpop.f32.mrb[0].mxu0
    %302 = vdwg.mxu0
    %v303 = vadd.f32 %v255, %v298
    %v304 = vxor.u32 %v303, 2147483648
    %v305 = vmul.f32 %v304, 1.442695
    %v306 = vpow.pop %v305
    %v307 = vadd.f32 %v306, 1.0
    %v308 = vrcp.pop %v307
    %v309 = vmul.f32 1.0, %v308
    %v310 = vtanh.pop %v303
    %v311 = vmul.f32 %v309, %v244
    %313 = vrot.lane.b32.xlu0 %v310, 64
    %v314 = vpop.permute.xlu0 %313
    %v316 = vmul.f32 %v309, %v314
    %318 = vrot.lane.b32.xlu0 %v316, 32
    %v319 = vpop.permute.xlu0 %318
    %v321 = vadd.f32 %v311, %v319
    %v322 = vtanh.pop %v321
    %324 = vrot.lane.b32.xlu0 %v322, 64
    %v325 = vpop.permute.xlu0 %324
    %v327 = vmul.f32 %v309, %v325
    %v328 = vrot.slane %v79, 3
    %v330 = vrot.slane %v82, 2
    %v332 = vsel %vm92, %v328, %v330
    %v333 = vpack.c.bf16 %v327, %v327
    %335 = vrot.lane.b32.xlu0 %v333, 32
    %v336 = vpop.permute.xlu0 %335
    %v338 = vsel %vm106, %v336, 0
    %340 = vmatprep.subr.bf16.mxu0 0
    %341 = vmatpush1.bf16.msra.mxu0 %v102
    %342 = vmatprep.subr.bf16.mxu0 0
    %343 = vmatpush1.bf16.msra.mxu0 %v103
    %344 = vmatprep.subr.bf16.mxu0 0
    %345 = vmatpush1.bf16.msra.mxu0 0
    %346 = vmatprep.subr.bf16.mxu0 0
    %347 = vmatpush1.bf16.msra.mxu0 0
    %348 = vmatprep.subr.bf16.mxu0 0
    %349 = vmatpush1.bf16.msra.mxu0 0
    %350 = vmatprep.subr.bf16.mxu0 0
    %351 = vmatpush1.bf16.msra.mxu0 0
    %352 = vmatprep.subr.bf16.mxu0 0
    %353 = vmatpush1.bf16.msra.mxu0 0
    %354 = vmatprep.subr.bf16.mxu0 0
    %355 = vmatpush1.bf16.msra.mxu0 0
    %356 = vmatprep.subr.bf16.mxu0 0
    %357 = vmatpush1.bf16.msra.mxu0 0
    %358 = vmatprep.subr.bf16.mxu0 0
    %359 = vmatpush1.bf16.msra.mxu0 0
    %360 = vmatprep.subr.bf16.mxu0 0
    %361 = vmatpush1.bf16.msra.mxu0 0
    %362 = vmatprep.subr.bf16.mxu0 0
    %363 = vmatpush1.bf16.msra.mxu0 0
    %364 = vmatprep.subr.bf16.mxu0 0
    %365 = vmatpush1.bf16.msra.mxu0 0
    %366 = vmatprep.subr.bf16.mxu0 0
    %367 = vmatpush1.bf16.msra.mxu0 0
    %368 = vmatprep.subr.bf16.mxu0 0
    %369 = vmatpush1.bf16.msra.mxu0 0
    %370 = vmatprep.subr.bf16.mxu0 0
    %371 = vmatpush1.bf16.msra.mxu0 0
    %372 = vmatprep.mubr.bf16.mxu0 0
    %373 = vmatmul.mubr.bf16.gmra.mrb[0].mxu0 %v338
    %v374 = vpop.f32.mrb[0].mxu0
    %v375 = vadd.f32 0.0, %v374
    %v376 = vpop.f32.mrb[0].mxu0
    %v377 = vpop.f32.mrb[0].mxu0
    %v378 = vpop.f32.mrb[0].mxu0
    %379 = vdwg.mxu0
    %v380 = vadd.f32 %v332, %v375
    %v381 = vxor.u32 %v380, 2147483648
    %v382 = vmul.f32 %v381, 1.442695
    %v383 = vpow.pop %v382
    %v384 = vadd.f32 %v383, 1.0
    %v385 = vrcp.pop %v384
    %v386 = vmul.f32 1.0, %v385
    %v387 = vtanh.pop %v380
    %v388 = vmul.f32 %v386, %v321
    %390 = vrot.lane.b32.xlu0 %v387, 64
    %v391 = vpop.permute.xlu0 %390
    %v393 = vmul.f32 %v386, %v391
    %395 = vrot.lane.b32.xlu0 %v393, 32
    %v396 = vpop.permute.xlu0 %395
    %v398 = vadd.f32 %v388, %v396
    %v399 = vtanh.pop %v398
    %401 = vrot.lane.b32.xlu0 %v399, 64
    %v402 = vpop.permute.xlu0 %401
    %v404 = vmul.f32 %v386, %v402
    %v405 = vrot.slane %v79, 4
    %v407 = vrot.slane %v82, 3
    %v409 = vsel %vm92, %v405, %v407
    %v410 = vpack.c.bf16 %v404, %v404
    %412 = vrot.lane.b32.xlu0 %v410, 32
    %v413 = vpop.permute.xlu0 %412
    %v415 = vsel %vm106, %v413, 0
    %417 = vmatprep.subr.bf16.mxu0 0
    %418 = vmatpush1.bf16.msra.mxu0 %v102
    %419 = vmatprep.subr.bf16.mxu0 0
    %420 = vmatpush1.bf16.msra.mxu0 %v103
    %421 = vmatprep.subr.bf16.mxu0 0
    %422 = vmatpush1.bf16.msra.mxu0 0
    %423 = vmatprep.subr.bf16.mxu0 0
    %424 = vmatpush1.bf16.msra.mxu0 0
    %425 = vmatprep.subr.bf16.mxu0 0
    %426 = vmatpush1.bf16.msra.mxu0 0
    %427 = vmatprep.subr.bf16.mxu0 0
    %428 = vmatpush1.bf16.msra.mxu0 0
    %429 = vmatprep.subr.bf16.mxu0 0
    %430 = vmatpush1.bf16.msra.mxu0 0
    %431 = vmatprep.subr.bf16.mxu0 0
    %432 = vmatpush1.bf16.msra.mxu0 0
    %433 = vmatprep.subr.bf16.mxu0 0
    %434 = vmatpush1.bf16.msra.mxu0 0
    %435 = vmatprep.subr.bf16.mxu0 0
    %436 = vmatpush1.bf16.msra.mxu0 0
    %437 = vmatprep.subr.bf16.mxu0 0
    %438 = vmatpush1.bf16.msra.mxu0 0
    %439 = vmatprep.subr.bf16.mxu0 0
    %440 = vmatpush1.bf16.msra.mxu0 0
    %441 = vmatprep.subr.bf16.mxu0 0
    %442 = vmatpush1.bf16.msra.mxu0 0
    %443 = vmatprep.subr.bf16.mxu0 0
    %444 = vmatpush1.bf16.msra.mxu0 0
    %445 = vmatprep.subr.bf16.mxu0 0
    %446 = vmatpush1.bf16.msra.mxu0 0
    %447 = vmatprep.subr.bf16.mxu0 0
    %448 = vmatpush1.bf16.msra.mxu0 0
    %449 = vmatprep.mubr.bf16.mxu0 0
    %450 = vmatmul.mubr.bf16.gmra.mrb[0].mxu0 %v415
    %v451 = vpop.f32.mrb[0].mxu0
    %v452 = vadd.f32 0.0, %v451
    %v453 = vpop.f32.mrb[0].mxu0
    %v454 = vpop.f32.mrb[0].mxu0
    %v455 = vpop.f32.mrb[0].mxu0
    %456 = vdwg.mxu0
    %v457 = vadd.f32 %v409, %v452
    %v458 = vxor.u32 %v457, 2147483648
    %v459 = vmul.f32 %v458, 1.442695
    %v460 = vpow.pop %v459
    %v461 = vadd.f32 %v460, 1.0
    %v462 = vrcp.pop %v461
    %v463 = vmul.f32 1.0, %v462
    %v464 = vtanh.pop %v457
    %v465 = vmul.f32 %v463, %v398
    %467 = vrot.lane.b32.xlu0 %v464, 64
    %v468 = vpop.permute.xlu0 %467
    %v470 = vmul.f32 %v463, %v468
    %472 = vrot.lane.b32.xlu0 %v470, 32
    %v473 = vpop.permute.xlu0 %472
    %v475 = vadd.f32 %v465, %v473
    %v476 = vtanh.pop %v475
    %478 = vrot.lane.b32.xlu0 %v476, 64
    %v479 = vpop.permute.xlu0 %478
    %v481 = vmul.f32 %v463, %v479
    %v482 = vrot.slane %v79, 5
    %v484 = vrot.slane %v82, 4
    %v486 = vsel %vm92, %v482, %v484
    %v487 = vpack.c.bf16 %v481, %v481
    %489 = vrot.lane.b32.xlu0 %v487, 32
    %v490 = vpop.permute.xlu0 %489
    %v492 = vsel %vm106, %v490, 0
    %494 = vmatprep.subr.bf16.mxu0 0
    %495 = vmatpush1.bf16.msra.mxu0 %v102
    %496 = vmatprep.subr.bf16.mxu0 0
    %497 = vmatpush1.bf16.msra.mxu0 %v103
    %498 = vmatprep.subr.bf16.mxu0 0
    %499 = vmatpush1.bf16.msra.mxu0 0
    %500 = vmatprep.subr.bf16.mxu0 0
    %501 = vmatpush1.bf16.msra.mxu0 0
    %502 = vmatprep.subr.bf16.mxu0 0
    %503 = vmatpush1.bf16.msra.mxu0 0
    %504 = vmatprep.subr.bf16.mxu0 0
    %505 = vmatpush1.bf16.msra.mxu0 0
    %506 = vmatprep.subr.bf16.mxu0 0
    %507 = vmatpush1.bf16.msra.mxu0 0
    %508 = vmatprep.subr.bf16.mxu0 0
    %509 = vmatpush1.bf16.msra.mxu0 0
    %510 = vmatprep.subr.bf16.mxu0 0
    %511 = vmatpush1.bf16.msra.mxu0 0
    %512 = vmatprep.subr.bf16.mxu0 0
    %513 = vmatpush1.bf16.msra.mxu0 0
    %514 = vmatprep.subr.bf16.mxu0 0
    %515 = vmatpush1.bf16.msra.mxu0 0
    %516 = vmatprep.subr.bf16.mxu0 0
    %517 = vmatpush1.bf16.msra.mxu0 0
    %518 = vmatprep.subr.bf16.mxu0 0
    %519 = vmatpush1.bf16.msra.mxu0 0
    %520 = vmatprep.subr.bf16.mxu0 0
    %521 = vmatpush1.bf16.msra.mxu0 0
    %522 = vmatprep.subr.bf16.mxu0 0
    %523 = vmatpush1.bf16.msra.mxu0 0
    %524 = vmatprep.subr.bf16.mxu0 0
    %525 = vmatpush1.bf16.msra.mxu0 0
    %526 = vmatprep.mubr.bf16.mxu0 0
    %527 = vmatmul.mubr.bf16.gmra.mrb[0].mxu0 %v492
    %v528 = vpop.f32.mrb[0].mxu0
    %v529 = vadd.f32 0.0, %v528
    %v530 = vpop.f32.mrb[0].mxu0
    %v531 = vpop.f32.mrb[0].mxu0
    %v532 = vpop.f32.mrb[0].mxu0
    %533 = vdwg.mxu0
    %v534 = vadd.f32 %v486, %v529
    %v535 = vxor.u32 %v534, 2147483648
    %v536 = vmul.f32 %v535, 1.442695
    %v537 = vpow.pop %v536
    %v538 = vadd.f32 %v537, 1.0
    %v539 = vrcp.pop %v538
    %v540 = vmul.f32 1.0, %v539
    %v541 = vtanh.pop %v534
    %v542 = vmul.f32 %v540, %v475
    %544 = vrot.lane.b32.xlu0 %v541, 64
    %v545 = vpop.permute.xlu0 %544
    %v547 = vmul.f32 %v540, %v545
    %549 = vrot.lane.b32.xlu0 %v547, 32
    %v550 = vpop.permute.xlu0 %549
    %v552 = vadd.f32 %v542, %v550
    %v553 = vtanh.pop %v552
    %555 = vrot.lane.b32.xlu0 %v553, 64
    %v556 = vpop.permute.xlu0 %555
    %v558 = vmul.f32 %v540, %v556
    %v559 = vrot.slane %v79, 6
    %v561 = vrot.slane %v82, 5
    %v563 = vsel %vm92, %v559, %v561
    %v564 = vpack.c.bf16 %v558, %v558
    %566 = vrot.lane.b32.xlu0 %v564, 32
    %v567 = vpop.permute.xlu0 %566
    %v569 = vsel %vm106, %v567, 0
    %571 = vmatprep.subr.bf16.mxu0 0
    %572 = vmatpush1.bf16.msra.mxu0 %v102
    %573 = vmatprep.subr.bf16.mxu0 0
    %574 = vmatpush1.bf16.msra.mxu0 %v103
    %575 = vmatprep.subr.bf16.mxu0 0
    %576 = vmatpush1.bf16.msra.mxu0 0
    %577 = vmatprep.subr.bf16.mxu0 0
    %578 = vmatpush1.bf16.msra.mxu0 0
    %579 = vmatprep.subr.bf16.mxu0 0
    %580 = vmatpush1.bf16.msra.mxu0 0
    %581 = vmatprep.subr.bf16.mxu0 0
    %582 = vmatpush1.bf16.msra.mxu0 0
    %583 = vmatprep.subr.bf16.mxu0 0
    %584 = vmatpush1.bf16.msra.mxu0 0
    %585 = vmatprep.subr.bf16.mxu0 0
    %586 = vmatpush1.bf16.msra.mxu0 0
    %587 = vmatprep.subr.bf16.mxu0 0
    %588 = vmatpush1.bf16.msra.mxu0 0
    %589 = vmatprep.subr.bf16.mxu0 0
    %590 = vmatpush1.bf16.msra.mxu0 0
    %591 = vmatprep.subr.bf16.mxu0 0
    %592 = vmatpush1.bf16.msra.mxu0 0
    %593 = vmatprep.subr.bf16.mxu0 0
    %594 = vmatpush1.bf16.msra.mxu0 0
    %595 = vmatprep.subr.bf16.mxu0 0
    %596 = vmatpush1.bf16.msra.mxu0 0
    %597 = vmatprep.subr.bf16.mxu0 0
    %598 = vmatpush1.bf16.msra.mxu0 0
    %599 = vmatprep.subr.bf16.mxu0 0
    %600 = vmatpush1.bf16.msra.mxu0 0
    %601 = vmatprep.subr.bf16.mxu0 0
    %602 = vmatpush1.bf16.msra.mxu0 0
    %603 = vmatprep.mubr.bf16.mxu0 0
    %604 = vmatmul.mubr.bf16.gmra.mrb[0].mxu0 %v569
    %v605 = vpop.f32.mrb[0].mxu0
    %v606 = vadd.f32 0.0, %v605
    %v607 = vpop.f32.mrb[0].mxu0
    %v608 = vpop.f32.mrb[0].mxu0
    %v609 = vpop.f32.mrb[0].mxu0
    %610 = vdwg.mxu0
    %v611 = vadd.f32 %v563, %v606
    %v612 = vxor.u32 %v611, 2147483648
    %v613 = vmul.f32 %v612, 1.442695
    %v614 = vpow.pop %v613
    %v615 = vadd.f32 %v614, 1.0
    %v616 = vrcp.pop %v615
    %v617 = vmul.f32 1.0, %v616
    %v618 = vtanh.pop %v611
    %v619 = vmul.f32 %v617, %v552
    %621 = vrot.lane.b32.xlu0 %v618, 64
    %v622 = vpop.permute.xlu0 %621
    %v624 = vmul.f32 %v617, %v622
    %626 = vrot.lane.b32.xlu0 %v624, 32
    %v627 = vpop.permute.xlu0 %626
    %v629 = vadd.f32 %v619, %v627
    %v630 = vtanh.pop %v629
    %632 = vrot.lane.b32.xlu0 %v630, 64
    %v633 = vpop.permute.xlu0 %632
    %v635 = vmul.f32 %v617, %v633
    %v636 = vrot.slane %v79, 7
    %v638 = vrot.slane %v82, 6
    %v640 = vsel %vm92, %v636, %v638
    %v641 = vpack.c.bf16 %v635, %v635
    %643 = vrot.lane.b32.xlu0 %v641, 32
    %v644 = vpop.permute.xlu0 %643
    %v646 = vsel %vm106, %v644, 0
    %648 = vmatprep.subr.bf16.mxu0 0
    %649 = vmatpush1.bf16.msra.mxu0 %v102
    %650 = vmatprep.subr.bf16.mxu0 0
    %651 = vmatpush1.bf16.msra.mxu0 %v103
    %652 = vmatprep.subr.bf16.mxu0 0
    %653 = vmatpush1.bf16.msra.mxu0 0
    %654 = vmatprep.subr.bf16.mxu0 0
    %655 = vmatpush1.bf16.msra.mxu0 0
    %656 = vmatprep.subr.bf16.mxu0 0
    %657 = vmatpush1.bf16.msra.mxu0 0
    %658 = vmatprep.subr.bf16.mxu0 0
    %659 = vmatpush1.bf16.msra.mxu0 0
    %660 = vmatprep.subr.bf16.mxu0 0
    %661 = vmatpush1.bf16.msra.mxu0 0
    %662 = vmatprep.subr.bf16.mxu0 0
    %663 = vmatpush1.bf16.msra.mxu0 0
    %664 = vmatprep.subr.bf16.mxu0 0
    %665 = vmatpush1.bf16.msra.mxu0 0
    %666 = vmatprep.subr.bf16.mxu0 0
    %667 = vmatpush1.bf16.msra.mxu0 0
    %668 = vmatprep.subr.bf16.mxu0 0
    %669 = vmatpush1.bf16.msra.mxu0 0
    %670 = vmatprep.subr.bf16.mxu0 0
    %671 = vmatpush1.bf16.msra.mxu0 0
    %672 = vmatprep.subr.bf16.mxu0 0
    %673 = vmatpush1.bf16.msra.mxu0 0
    %674 = vmatprep.subr.bf16.mxu0 0
    %675 = vmatpush1.bf16.msra.mxu0 0
    %676 = vmatprep.subr.bf16.mxu0 0
    %677 = vmatpush1.bf16.msra.mxu0 0
    %678 = vmatprep.subr.bf16.mxu0 0
    %679 = vmatpush1.bf16.msra.mxu0 0
    %680 = vmatprep.mubr.bf16.mxu0 0
    %681 = vmatmul.mubr.bf16.gmra.mrb[0].mxu0 %v646
    %v682 = vpop.f32.mrb[0].mxu0
    %v683 = vadd.f32 0.0, %v682
    %v684 = vpop.f32.mrb[0].mxu0
    %v685 = vpop.f32.mrb[0].mxu0
    %v686 = vpop.f32.mrb[0].mxu0
    %687 = vdwg.mxu0
    %v688 = vadd.f32 %v640, %v683
    %v689 = vxor.u32 %v688, 2147483648
    %v690 = vmul.f32 %v689, 1.442695
    %v691 = vpow.pop %v690
    %v692 = vadd.f32 %v691, 1.0
    %v693 = vrcp.pop %v692
    %v694 = vmul.f32 1.0, %v693
    %v695 = vtanh.pop %v688
    %v696 = vmul.f32 %v694, %v629
    %698 = vrot.lane.b32.xlu0 %v695, 64
    %v699 = vpop.permute.xlu0 %698
    %v701 = vmul.f32 %v694, %v699
    %703 = vrot.lane.b32.xlu0 %v701, 32
    %v704 = vpop.permute.xlu0 %703
    %v706 = vadd.f32 %v696, %v704
    %v707 = vtanh.pop %v706
    %709 = vrot.lane.b32.xlu0 %v707, 64
    %v710 = vpop.permute.xlu0 %709
    %v712 = vmul.f32 %v694, %v710
    %v713 = vld [vmem:[%s4] sm:$0xff]
    %v714 = vld [vmem:[%s4 + $0x8] sm:$0xff]
    %v715 = vld [vmem:[%s4 + $0x10] sm:$0xff]
    %v716 = vld [vmem:[%s4 + $0x18] sm:$0xff]
    %v717 = vld [vmem:[%s5] sm:$0x1]
    %v719 = vlaneseq
    %v720 = vshrl.u32 %v719, 7
    %v721 = vsub.s32 0, %v720
    %v722 = vrot.slane %v717, %v721
    %725 = vrot.lane.b32.xlu0 %v712, 32
    %v726 = vpop.permute.xlu0 %725
    %v727 = vsel %vm106, %v726, 0
    %729 = vmatprep.subr.mxu0 0.0
    %730 = vmatpush1.msra.mxu0 %v713
    %731 = vmatprep.subr.mxu0 0.0
    %732 = vmatpush1.msra.mxu0 %v714
    %733 = vmatprep.subr.mxu0 0.0
    %734 = vmatpush1.msra.mxu0 %v715
    %735 = vmatprep.subr.mxu0 0.0
    %736 = vmatpush1.msra.mxu0 %v716
    %737 = vmatprep.subr.mxu0 0.0
    %738 = vmatpush1.msra.mxu0 0.0
    %739 = vmatprep.subr.mxu0 0.0
    %740 = vmatpush1.msra.mxu0 0.0
    %741 = vmatprep.subr.mxu0 0.0
    %742 = vmatpush1.msra.mxu0 0.0
    %743 = vmatprep.subr.mxu0 0.0
    %744 = vmatpush1.msra.mxu0 0.0
    %745 = vmatprep.subr.mxu0 0.0
    %746 = vmatpush1.msra.mxu0 0.0
    %747 = vmatprep.subr.mxu0 0.0
    %748 = vmatpush1.msra.mxu0 0.0
    %749 = vmatprep.subr.mxu0 0.0
    %750 = vmatpush1.msra.mxu0 0.0
    %751 = vmatprep.subr.mxu0 0.0
    %752 = vmatpush1.msra.mxu0 0.0
    %753 = vmatprep.subr.mxu0 0.0
    %754 = vmatpush1.msra.mxu0 0.0
    %755 = vmatprep.subr.mxu0 0.0
    %756 = vmatpush1.msra.mxu0 0.0
    %757 = vmatprep.subr.mxu0 0.0
    %758 = vmatpush1.msra.mxu0 0.0
    %759 = vmatprep.subr.mxu0 0.0
    %760 = vmatpush1.msra.mxu0 0.0
    %761 = vmatprep.subr.mxu0 0.0
    %762 = vmatpush1.msra.mxu0 0.0
    %763 = vmatprep.subr.mxu0 0.0
    %764 = vmatpush1.msra.mxu0 0.0
    %765 = vmatprep.subr.mxu0 0.0
    %766 = vmatpush1.msra.mxu0 0.0
    %767 = vmatprep.subr.mxu0 0.0
    %768 = vmatpush1.msra.mxu0 0.0
    %769 = vmatprep.subr.mxu0 0.0
    %770 = vmatpush1.msra.mxu0 0.0
    %771 = vmatprep.subr.mxu0 0.0
    %772 = vmatpush1.msra.mxu0 0.0
    %773 = vmatprep.subr.mxu0 0.0
    %774 = vmatpush1.msra.mxu0 0.0
    %775 = vmatprep.subr.mxu0 0.0
    %776 = vmatpush1.msra.mxu0 0.0
    %777 = vmatprep.subr.mxu0 0.0
    %778 = vmatpush1.msra.mxu0 0.0
    %779 = vmatprep.subr.mxu0 0.0
    %780 = vmatpush1.msra.mxu0 0.0
    %781 = vmatprep.subr.mxu0 0.0
    %782 = vmatpush1.msra.mxu0 0.0
    %783 = vmatprep.subr.mxu0 0.0
    %784 = vmatpush1.msra.mxu0 0.0
    %785 = vmatprep.subr.mxu0 0.0
    %786 = vmatpush1.msra.mxu0 0.0
    %787 = vmatprep.subr.mxu0 0.0
    %788 = vmatpush1.msra.mxu0 0.0
    %789 = vmatprep.subr.mxu0 0.0
    %790 = vmatpush1.msra.mxu0 0.0
    %791 = vmatprep.subr.mxu0 0.0
    %792 = vmatpush1.msra.mxu0 0.0
    %793 = vmatprep.mubr.f32.mxu0 0.0
    %794 = vmatmul.mubr.f32.gmra.mrb[0].mxu0 %v727
    %v795 = vpop.f32.mrb[0].mxu0
    %v796 = vadd.f32 %v722, %v795
    %v797 = vpop.f32.mrb[0].mxu0
    %798 = vdwg.mxu0
    %799 = vst [vmem:[#allocation2] sm:$0x3] %v796
    // Predicated region
    $region26: #{lstm_forward.1} parent=1 // pred_check
      _
    $region27: #{lstm_forward.1} parent=1 // pred_check_branch
      %801 = sbr.rel (0) target = $region29
    $region28: #{lstm_forward.1} parent=1 // pred_region
      %s803 = ssub.s32 32, 32
      %804 = vsyncadd [#allocation3], %s803
      %s806 = sshll.u32 [#allocation2], 4
      %s807 = int_to_ptr.vmem [resolvable:$true] %s806
      %809 = dma.vmem_to_hbm [thread:$0]  %s807, 32, %s6, [#allocation3]
    $region29: #{lstm_forward.1} parent=1 // pred_fallthru
      _
    // Predicated region
    $region30: #{lstm_forward.1} parent=1 // pred_check
      _
    $region31: #{lstm_forward.1} parent=1 // pred_check_branch
      %811 = sbr.rel (0) target = $region33
    $region32: #{lstm_forward.1} parent=1 // pred_region
      %812 = dma.done [#allocation3], 32
    $region33: #{lstm_forward.1} parent=1 // pred_fallthru
      _
    %813 = vsyncpa [#allocation3], 1

</llo_original>
